<compile_context>
chip_gen: v7x
topology: tpu7x:2x2x1
jax: 0.10.0
libtpu: 0.0.40
codegen_flags: <defaults>
</compile_context>

<pallas_src>
import functools

import jax
import jax.numpy as jnp
from jax import lax
from jax.experimental import pallas as pl
from jax.experimental.pallas import tpu as pltpu


# ---------------------------------------------------------------------------
# Helpers
# ---------------------------------------------------------------------------

_GELU_C = 0.7978845608028654  # sqrt(2 / pi)


def _gelu_tanh(x):
    # GPT-2 tanh-approximation GELU (matches the PyTorch GELU module).
    return 0.5 * x * (1.0 + jnp.tanh(_GELU_C * (x + 0.044715 * x * x * x)))


def _round_up(x, m):
    return (x + m - 1) // m * m


def _pad_to(a, target_shape):
    pads = [(0, t - s) for s, t in zip(a.shape, target_shape)]
    if all(p == (0, 0) for p in pads):
        return a
    return jnp.pad(a, pads)


def _pick_tile(dim, pref):
    # Full-extent block when the dim is small (exempt from the (8,128) rule),
    # otherwise a fixed tile (pref is a multiple of 8 and 128) with padding.
    return dim if dim <= pref else pref


# ---------------------------------------------------------------------------
# Tiled linear (+ optional fused GELU) kernel
# ---------------------------------------------------------------------------

def _linear_kernel(x_ref, w_ref, b_ref, o_ref, acc_ref, *, activation):
    @pl.when(pl.program_id(2) == 0)
    def _init():
        acc_ref[...] = jnp.zeros(acc_ref.shape, acc_ref.dtype)

    acc_ref[...] += jnp.dot(
        x_ref[...].astype(jnp.bfloat16),      # activations f32 -> bf16 for MXU
        w_ref[...].astype(jnp.bfloat16),      # weights already stored in bf16
        preferred_element_type=jnp.float32)   # f32 accumulation

    @pl.when(pl.program_id(2) == pl.num_programs(2) - 1)
    def _finalize():
        y = acc_ref[...] + b_ref[...]
        if activation == "gelu":
            y = _gelu_tanh(y)
        o_ref[...] = y.astype(o_ref.dtype)


def pallas_linear(x2d, w, b=None, activation=None, *,
                  tm_pref=256, tn_pref=512, tk_pref=512):
    """y = act(x @ w + b).  x2d: (M, K) f32, w: (K, N), b: (1, N) f32 or None."""
    M, K = x2d.shape
    Kw, N = w.shape
    assert K == Kw
    if b is None:
        b = jnp.zeros((1, N), jnp.float32)

    tm, tn, tk = _pick_tile(M, tm_pref), _pick_tile(N, tn_pref), _pick_tile(K, tk_pref)
    Mp, Np, Kp = _round_up(M, tm), _round_up(N, tn), _round_up(K, tk)

    xp = _pad_to(x2d, (Mp, Kp))
    wp = _pad_to(w, (Kp, Np))
    bp = _pad_to(b.astype(jnp.float32).reshape(1, N), (1, Np))

    out = pl.pallas_call(
        functools.partial(_linear_kernel, activation=activation),
        out_shape=jax.ShapeDtypeStruct((Mp, Np), jnp.float32),
        grid=(Mp // tm, Np // tn, Kp // tk),
        in_specs=[
            pl.BlockSpec((tm, tk), lambda i, j, k: (i, k)),
            pl.BlockSpec((tk, tn), lambda i, j, k: (k, j)),
            pl.BlockSpec((1, tn), lambda i, j, k: (0, j)),
        ],
        out_specs=pl.BlockSpec((tm, tn), lambda i, j, k: (i, j)),
        scratch_shapes=[pltpu.VMEM((tm, tn), jnp.float32)],
        compiler_params=pltpu.CompilerParams(
            dimension_semantics=("parallel", "parallel", "arbitrary")),
        cost_estimate=pl.CostEstimate(
            flops=2 * Mp * Np * Kp,
            transcendentals=(Mp * Np if activation == "gelu" else 0),
            bytes_accessed=4 * Mp * Kp + 2 * Kp * Np + 4 * Mp * Np),
    )(xp, wp, bp)
    return out[:M, :N]


# ---------------------------------------------------------------------------
# LayerNorm kernel
# ---------------------------------------------------------------------------

def _layernorm_kernel(x_ref, g_ref, b_ref, o_ref, *, eps):
    x = x_ref[...].astype(jnp.float32)
    mean = jnp.mean(x, axis=-1, keepdims=True)
    xc = x - mean
    var = jnp.mean(xc * xc, axis=-1, keepdims=True)   # unbiased=False
    inv = lax.rsqrt(var + eps)
    o_ref[...] = (xc * inv * g_ref[...] + b_ref[...]).astype(o_ref.dtype)


def pallas_layernorm(x2d, scale, shift, *, eps=1e-5, tm_pref=256):
    M, D = x2d.shape
    tm = _pick_tile(M, tm_pref)
    Mp = _round_up(M, tm)
    xp = _pad_to(x2d, (Mp, D))
    out = pl.pallas_call(
        functools.partial(_layernorm_kernel, eps=eps),
        out_shape=jax.ShapeDtypeStruct((Mp, D), x2d.dtype),
        grid=(Mp // tm,),
        in_specs=[
            pl.BlockSpec((tm, D), lambda i: (i, 0)),
            pl.BlockSpec((1, D), lambda i: (0, 0)),
            pl.BlockSpec((1, D), lambda i: (0, 0)),
        ],
        out_specs=pl.BlockSpec((tm, D), lambda i: (i, 0)),
        compiler_params=pltpu.CompilerParams(dimension_semantics=("parallel",)),
    )(xp, scale.reshape(1, D).astype(jnp.float32),
      shift.reshape(1, D).astype(jnp.float32))
    return out[:M]


# ---------------------------------------------------------------------------
# Flash-style causal attention kernel
# ---------------------------------------------------------------------------

def _flash_attn_kernel(q_ref, k_ref, v_ref, o_ref, m_s, l_s, acc_s, *, scale):
    qi = pl.program_id(2)
    ki = pl.program_id(3)
    tq = q_ref.shape[2]
    tk = k_ref.shape[2]
    q_start = qi * tq
    k_start = ki * tk

    @pl.when(ki == 0)
    def _init():
        m_s[...] = jnp.full(m_s.shape, -jnp.inf, jnp.float32)
        l_s[...] = jnp.zeros(l_s.shape, jnp.float32)
        acc_s[...] = jnp.zeros(acc_s.shape, jnp.float32)

    # Causal block skipping: skip kv tiles lying entirely above the diagonal.
    @pl.when(k_start <= q_start + tq - 1)
    def _compute():
        q = (q_ref[0, 0] * scale).astype(jnp.bfloat16)   # fold 1/sqrt(hd) into q
        k = k_ref[0, 0].astype(jnp.bfloat16)
        s = lax.dot_general(q, k, (((1,), (1,)), ((), ())),
                            preferred_element_type=jnp.float32)   # (tq, tk)

        # Causal mask in global indices (also masks any zero-padded kv rows).
        row = q_start + lax.broadcasted_iota(jnp.int32, (tq, tk), 0)
        col = k_start + lax.broadcasted_iota(jnp.int32, (tq, tk), 1)
        s = jnp.where(col <= row, s, -jnp.inf)

        m_prev = m_s[...]
        m_new = jnp.maximum(m_prev, jnp.max(s, axis=-1, keepdims=True))
        alpha = jnp.exp(m_prev - m_new)
        p = jnp.exp(s - m_new)
        l_s[...] = alpha * l_s[...] + jnp.sum(p, axis=-1, keepdims=True)
        acc_s[...] = alpha * acc_s[...] + jnp.dot(
            p.astype(jnp.bfloat16), v_ref[0, 0].astype(jnp.bfloat16),
            preferred_element_type=jnp.float32)
        m_s[...] = m_new

    @pl.when(ki == pl.num_programs(3) - 1)
    def _finalize():
        inv_l = pl.reciprocal(l_s[...], approx=True)
        o_ref[0, 0] = (acc_s[...] * inv_l).astype(o_ref.dtype)
        # TODO(synk): nn.Dropout on attention weights is identity (eval / p=0).


def pallas_flash_attention(q, k, v, *, tq_pref=128, tk_pref=128):
    """Causal multi-head attention.  q, k, v: (B, H, T, hd) f32."""
    B, H, T, hd = q.shape
    tq = _pick_tile(T, tq_pref)
    tk = _pick_tile(T, tk_pref)
    Tqp, Tkp = _round_up(T, tq), _round_up(T, tk)
    qp = _pad_to(q, (B, H, Tqp, hd))
    kp = _pad_to(k, (B, H, Tkp, hd))
    vp = _pad_to(v, (B, H, Tkp, hd))
    scale = 1.0 / (hd ** 0.5)

    out = pl.pallas_call(
        functools.partial(_flash_attn_kernel, scale=scale),
        out_shape=jax.ShapeDtypeStruct((B, H, Tqp, hd), q.dtype),
        grid=(B, H, Tqp // tq, Tkp // tk),
        in_specs=[
            pl.BlockSpec((1, 1, tq, hd), lambda b, h, qi, ki: (b, h, qi, 0)),
            pl.BlockSpec((1, 1, tk, hd), lambda b, h, qi, ki: (b, h, ki, 0)),
            pl.BlockSpec((1, 1, tk, hd), lambda b, h, qi, ki: (b, h, ki, 0)),
        ],
        out_specs=pl.BlockSpec((1, 1, tq, hd), lambda b, h, qi, ki: (b, h, qi, 0)),
        scratch_shapes=[
            pltpu.VMEM((tq, 1), jnp.float32),    # running row max m
            pltpu.VMEM((tq, 1), jnp.float32),    # running denominator l
            pltpu.VMEM((tq, hd), jnp.float32),   # running output accumulator
        ],
        compiler_params=pltpu.CompilerParams(
            dimension_semantics=("parallel", "parallel", "parallel", "arbitrary")),
        cost_estimate=pl.CostEstimate(
            flops=4 * B * H * Tqp * Tkp * hd,
            transcendentals=B * H * Tqp * Tkp,
            bytes_accessed=16 * B * H * T * hd),
    )(qp, kp, vp)
    return out[:, :, :T, :]


# ---------------------------------------------------------------------------
# GPT-2 model (params + forward glue; all heavy math runs in Pallas kernels)
# ---------------------------------------------------------------------------
# NOTE: the PyTorch spec has typos (`shorcut`, `contaguous`, missing `drop_emb`
# and `mask` buffer registration); we implement the intended standard pre-LN
# GPT-2 forward. All dropouts are identity (eval / p=0).

class GPT2Pallas:
    def __init__(self, cfg, key):
        self.cfg = cfg
        D, V, C, L = cfg["emb_dim"], cfg["vocab_size"], cfg["context_length"], cfg["n_layers"]
        keys = jax.random.split(key, 4 + L)

        def winit(k, shape, dtype=jnp.bfloat16):
            return (0.02 * jax.random.normal(k, shape, jnp.float32)).astype(dtype)

        self.tok_emb = winit(keys[0], (V, D), jnp.float32)
        self.pos_emb = winit(keys[1], (C, D), jnp.float32)
        self.w_head = winit(keys[2], (D, V))                   # out_head, bias=False
        self.lnf_scale = jnp.ones((1, D), jnp.float32)
        self.lnf_shift = jnp.ones((1, D), jnp.float32)         # spec inits shift to ones

        self.blocks = []
        for i in range(L):
            ks = jax.random.split(keys[4 + i], 8)
            qkv_b = (winit(ks[4], (1, 3 * D), jnp.float32) if cfg["qkv_bias"]
                     else jnp.zeros((1, 3 * D), jnp.float32))
            self.blocks.append(dict(
                ln1_scale=jnp.ones((1, D), jnp.float32),
                ln1_shift=jnp.ones((1, D), jnp.float32),
                w_qkv=winit(ks[0], (D, 3 * D)),                # fused W_q | W_k | W_v
                b_qkv=qkv_b,
                w_o=winit(ks[1], (D, D)),
                b_o=jnp.zeros((1, D), jnp.float32),
                ln2_scale=jnp.ones((1, D), jnp.float32),
                ln2_shift=jnp.ones((1, D), jnp.float32),
                w_ff1=winit(ks[2], (D, 4 * D)),
                b_ff1=jnp.zeros((1, 4 * D), jnp.float32),
                w_ff2=winit(ks[3], (4 * D, D)),
                b_ff2=jnp.zeros((1, D), jnp.float32),
            ))

    def _block(self, x, p):
        cfg = self.cfg
        B, T, D = x.shape
        H = cfg["n_heads"]
        hd = D // H
        x2d = x.reshape(B * T, D)

        # --- attention sub-block (pre-LN) ---
        h = pallas_layernorm(x2d, p["ln1_scale"], p["ln1_shift"])
        qkv = pallas_linear(h, p["w_qkv"], p["b_qkv"]).reshape(B, T, 3, H, hd)
        q = qkv[:, :, 0].transpose(0, 2, 1, 3)                 # (B, H, T, hd)
        k = qkv[:, :, 1].transpose(0, 2, 1, 3)
        v = qkv[:, :, 2].transpose(0, 2, 1, 3)
        ctx = pallas_flash_attention(q, k, v)                  # (B, H, T, hd)
        ctx2d = ctx.transpose(0, 2, 1, 3).reshape(B * T, D)
        attn_out = pallas_linear(ctx2d, p["w_o"], p["b_o"])
        x2d = x2d + attn_out                                   # residual (dropout = identity)

        # --- feed-forward sub-block (pre-LN), GELU fused into first linear ---
        h = pallas_layernorm(x2d, p["ln2_scale"], p["ln2_shift"])
        h = pallas_linear(h, p["w_ff1"], p["b_ff1"], activation="gelu")
        h = pallas_linear(h, p["w_ff2"], p["b_ff2"])
        x2d = x2d + h                                          # residual (dropout = identity)
        return x2d.reshape(B, T, D)

    def __call__(self, in_idx):
        cfg = self.cfg
        B, T = in_idx.shape
        D, V = cfg["emb_dim"], cfg["vocab_size"]
        # Embedding lookup is a gather -> plain JAX (no clean tiled Pallas form).
        x = jnp.take(self.tok_emb, in_idx, axis=0) + self.pos_emb[:T][None]
        # TODO(synk): drop_emb / drop_shortcut dropouts are identity (eval / p=0).
        for p in self.blocks:
            x = self._block(x, p)
        x2d = pallas_layernorm(x.reshape(B * T, D), self.lnf_scale, self.lnf_shift)
        logits = pallas_linear(x2d, self.w_head, None)
        return logits.reshape(B, T, V)


# ---------------------------------------------------------------------------
# Plain-JAX reference (matching bf16 matmul precision) for a sanity check
# ---------------------------------------------------------------------------

def _ref_linear(x2d, w, b=None):
    y = jnp.dot(x2d.astype(jnp.bfloat16), w.astype(jnp.bfloat16),
                preferred_element_type=jnp.float32)
    if b is not None:
        y = y + b.astype(jnp.float32)
    return y


def _ref_layernorm(x, g, s, eps=1e-5):
    mean = x.mean(-1, keepdims=True)
    var = ((x - mean) ** 2).mean(-1, keepdims=True)
    return (x - mean) * lax.rsqrt(var + eps) * g.reshape(-1) + s.reshape(-1)


def _ref_attention(q, k, v):
    B, H, T, hd = q.shape
    qb = (q * (1.0 / hd ** 0.5)).astype(jnp.bfloat16)
    s = jnp.einsum("bhqd,bhkd->bhqk", qb, k.astype(jnp.bfloat16),
                   preferred_element_type=jnp.float32)
    mask = jnp.triu(jnp.ones((T, T), bool), k=1)
    s = jnp.where(mask, -jnp.inf, s)
    p = jax.nn.softmax(s, axis=-1)
    return jnp.einsum("bhqk,bhkd->bhqd", p.astype(jnp.bfloat16),
                      v.astype(jnp.bfloat16), preferred_element_type=jnp.float32)


def gpt2_reference(model, in_idx):
    cfg = model.cfg
    B, T = in_idx.shape
    D, H, V = cfg["emb_dim"], cfg["n_heads"], cfg["vocab_size"]
    hd = D // H
    x = jnp.take(model.tok_emb, in_idx, axis=0) + model.pos_emb[:T][None]
    for p in model.blocks:
        h = _ref_layernorm(x, p["ln1_scale"], p["ln1_shift"])
        qkv = _ref_linear(h.reshape(B * T, D), p["w_qkv"], p["b_qkv"]).reshape(B, T, 3, H, hd)
        q = qkv[:, :, 0].transpose(0, 2, 1, 3)
        k = qkv[:, :, 1].transpose(0, 2, 1, 3)
        v = qkv[:, :, 2].transpose(0, 2, 1, 3)
        ctx = _ref_attention(q, k, v).transpose(0, 2, 1, 3).reshape(B * T, D)
        x = x + _ref_linear(ctx, p["w_o"], p["b_o"]).reshape(B, T, D)
        h = _ref_layernorm(x, p["ln2_scale"], p["ln2_shift"])
        h = _gelu_tanh(_ref_linear(h.reshape(B * T, D), p["w_ff1"], p["b_ff1"]))
        x = x + _ref_linear(h, p["w_ff2"], p["b_ff2"]).reshape(B, T, D)
    x = _ref_layernorm(x, model.lnf_scale, model.lnf_shift)
    return _ref_linear(x.reshape(B * T, D), model.w_head, None).reshape(B, T, V)


# ---------------------------------------------------------------------------
# Demo / self-check
# ---------------------------------------------------------------------------

if __name__ == "__main__":
    cfg = dict(vocab_size=100, context_length=16, emb_dim=32,
               n_heads=4, n_layers=2, drop_rate=0.0, qkv_bias=False)

    model = GPT2Pallas(cfg, key=jax.random.PRNGKey(0))
    in_idx = jax.random.randint(jax.random.PRNGKey(0), (2, 8), 0, cfg["vocab_size"])

    logits = model(in_idx)
    logits = jax.block_until_ready(logits)

    ref = gpt2_reference(model, in_idx)
    assert logits.shape == (2, 8, cfg["vocab_size"])
    max_err = float(jnp.max(jnp.abs(logits - ref)))
    assert jnp.allclose(logits, ref, atol=1e-2, rtol=1e-2), f"max_err={max_err}"

    print("KERNEL_OK")
</pallas_src>

<mosaic_0001>
module attributes {stable_mosaic.version = 11 : i64} {
  func.func @_layernorm_kernel(%arg0: i32, %arg1: memref<16x32xf32, #tpu.memory_space<vmem>>, %arg2: memref<1x32xf32, #tpu.memory_space<vmem>>, %arg3: memref<1x32xf32, #tpu.memory_space<vmem>>, %arg4: memref<16x32xf32, #tpu.memory_space<vmem>>) attributes {dimension_semantics = [#tpu.dimension_semantics<parallel>], iteration_bounds = array<i64: 1>, scalar_prefetch = 0 : i64, scratch_operands = 0 : i64, tpu.core_type = #tpu.core_type<tc>, window_params = [{transform_indices = @transform_0, window_bounds = array<i64: 16, 32>}, {pipeline_mode = #tpu.pipeline_mode<synchronous>, transform_indices = @transform_1, window_bounds = array<i64: 1, 32>}, {pipeline_mode = #tpu.pipeline_mode<synchronous>, transform_indices = @transform_2, window_bounds = array<i64: 1, 32>}, {transform_indices = @transform_3, window_bounds = array<i64: 16, 32>}]} {
    %c0 = arith.constant 0 : index
    %c0_0 = arith.constant 0 : index
    %0 = vector.load %arg1[%c0, %c0_0] : memref<16x32xf32, #tpu.memory_space<vmem>>, vector<16x32xf32>
    %cst = arith.constant dense<0.000000e+00> : vector<16xf32>
    %1 = vector.multi_reduction <add>, %0, %cst [1] : vector<16x32xf32> to vector<16xf32>
    %2 = vector.shape_cast %1 : vector<16xf32> to vector<16x1xf32>
    %cst_1 = arith.constant 3.200000e+01 : f32
    %3 = vector.broadcast %cst_1 : f32 to vector<16x1xf32>
    %4 = arith.divf %2, %3 : vector<16x1xf32>
    %5 = vector.broadcast %4 : vector<16x1xf32> to vector<16x32xf32>
    %6 = arith.subf %0, %5 : vector<16x32xf32>
    %7 = arith.mulf %6, %6 : vector<16x32xf32>
    %cst_2 = arith.constant dense<0.000000e+00> : vector<16xf32>
    %8 = vector.multi_reduction <add>, %7, %cst_2 [1] : vector<16x32xf32> to vector<16xf32>
    %9 = vector.shape_cast %8 : vector<16xf32> to vector<16x1xf32>
    %cst_3 = arith.constant 3.200000e+01 : f32
    %10 = vector.broadcast %cst_3 : f32 to vector<16x1xf32>
    %11 = arith.divf %9, %10 : vector<16x1xf32>
    %cst_4 = arith.constant 9.99999974E-6 : f32
    %12 = vector.broadcast %cst_4 : f32 to vector<16x1xf32>
    %13 = arith.addf %11, %12 : vector<16x1xf32>
    %14 = math.rsqrt %13 : vector<16x1xf32>
    %15 = vector.broadcast %14 : vector<16x1xf32> to vector<16x32xf32>
    %16 = arith.mulf %6, %15 : vector<16x32xf32>
    %c0_5 = arith.constant 0 : index
    %c0_6 = arith.constant 0 : index
    %17 = vector.load %arg2[%c0_5, %c0_6] : memref<1x32xf32, #tpu.memory_space<vmem>>, vector<1x32xf32>
    %18 = vector.broadcast %17 : vector<1x32xf32> to vector<16x32xf32>
    %19 = arith.mulf %16, %18 : vector<16x32xf32>
    %c0_7 = arith.constant 0 : index
    %c0_8 = arith.constant 0 : index
    %20 = vector.load %arg3[%c0_7, %c0_8] : memref<1x32xf32, #tpu.memory_space<vmem>>, vector<1x32xf32>
    %21 = vector.broadcast %20 : vector<1x32xf32> to vector<16x32xf32>
    %22 = arith.addf %19, %21 : vector<16x32xf32>
    %c0_9 = arith.constant 0 : index
    %c0_10 = arith.constant 0 : index
    %23 = vector.load %arg4[%c0_9, %c0_10] : memref<16x32xf32, #tpu.memory_space<vmem>>, vector<16x32xf32>
    tpu.vector_store %arg4[%c0_9, %c0_10], %22 {strides = array<i32>} : memref<16x32xf32, #tpu.memory_space<vmem>>, vector<16x32xf32>,
    return
  }
  func.func @transform_0(%arg0: i32) -> (i32, i32) {
    %c0_i32 = arith.constant 0 : i32
    %c0_i32_0 = arith.constant 0 : i32
    return %arg0, %c0_i32 : i32, i32
  }
  func.func @transform_1(%arg0: i32) -> (i32, i32) {
    %c0_i32 = arith.constant 0 : i32
    %c0_i32_0 = arith.constant 0 : i32
    %c0_i32_1 = arith.constant 0 : i32
    return %c0_i32, %c0_i32_0 : i32, i32
  }
  func.func @transform_2(%arg0: i32) -> (i32, i32) {
    %c0_i32 = arith.constant 0 : i32
    %c0_i32_0 = arith.constant 0 : i32
    %c0_i32_1 = arith.constant 0 : i32
    return %c0_i32, %c0_i32_0 : i32, i32
  }
  func.func @transform_3(%arg0: i32) -> (i32, i32) {
    %c0_i32 = arith.constant 0 : i32
    %c0_i32_0 = arith.constant 0 : i32
    return %arg0, %c0_i32 : i32, i32
  }
}

</mosaic_0001>

<llo_original>
// kernel: tpu_custom_call.1
$region0: #{tpu_custom_call.1}
  #allocation0 [shape = 'u32[]', space=smem, size = 0x4, offset = 0x4, fixed_abs, tag = 'smem constant byte address 0x4 - core index']
  #allocation1 [shape = 'u32[144,128]{1,0:T(1,128)}', space=vmem, size = 0x12000, scoped, tag = 'internal scratch']
  %s0 = inlined_call_operand.hbm [shape: f32[16,32], index: 0, kind: input, shape index: {}]
  %s1 = inlined_call_operand.vmem [shape: f32[1,32], index: 1, kind: input, shape index: {}]
  %s2 = inlined_call_operand.vmem [shape: f32[1,32], index: 2, kind: input, shape index: {}]
  %s3 = inlined_call_operand.hbm [shape: f32[16,32], index: 3, kind: output, shape index: {}]
  %s4 = sld [smem:[#allocation0]]
  $region26: #{tpu_custom_call.1} parent=0
    _
  %s6 = ssub.s32 1, %s4
  %s7 = scalar_select 0, %s6, %s4
  $region1: #{tpu_custom_call.1} parent=0
    #allocation2 [shape = 'u8[8192]{0}', space=vmem, size = 0x2000, scoped, tag = 'input window, operand 0, single buffered']
    #allocation3 [shape = 's32[1]{0}', space=sflag, size = 0x4, scoped, tag = 'scoped memory for tpu_custom_call.1']
    #allocation4 [shape = 's32[1]{0}', space=sflag, size = 0x4, scoped, tag = 'scoped memory for tpu_custom_call.1']
    #allocation5 [shape = 'u8[8192]{0}', space=vmem, size = 0x2000, scoped, tag = 'output window, operand 0, single buffered']
    %8 = vsyncpa [#allocation3], 0
    %9 = vsyncpa [#allocation4], 0
    // Predicated region
    $region2: #{tpu_custom_call.1} parent=1 // pred_check
      _
    $region3: #{tpu_custom_call.1} parent=1 // pred_check_branch
      %11 = sbr.rel (0) target = $region5
    $region4: #{tpu_custom_call.1} parent=1 // pred_region
      %s13 = ssub.s32 256, 256
      %14 = vsyncadd [#allocation3], %s13
      %s15 = sshll.u32 [#allocation2], 4
      %s16 = int_to_ptr.vmem [resolvable:$true] %s15
      %21 = dma.hbm_to_vmem [thread:$0]  %s0, 256, %s16, [#allocation3], 128, 128, 8
    $region5: #{tpu_custom_call.1} parent=1 // pred_fallthru
      _
    // Predicated region
    $region6: #{tpu_custom_call.1} parent=1 // pred_check
      _
    $region7: #{tpu_custom_call.1} parent=1 // pred_check_branch
      %23 = sbr.rel (0) target = $region9
    $region8: #{tpu_custom_call.1} parent=1 // pred_region
      _
    $region9: #{tpu_custom_call.1} parent=1 // pred_fallthru
      _
    // Predicated region
    $region10: #{tpu_custom_call.1} parent=1 // pred_check
      _
    $region11: #{tpu_custom_call.1} parent=1 // pred_check_branch
      %25 = sbr.rel (0) target = $region13
    $region12: #{tpu_custom_call.1} parent=1 // pred_region
      _
    $region13: #{tpu_custom_call.1} parent=1 // pred_fallthru
      _
    // Predicated region
    $region14: #{tpu_custom_call.1} parent=1 // pred_check
      _
    $region15: #{tpu_custom_call.1} parent=1 // pred_check_branch
      %27 = sbr.rel (0) target = $region17
    $region16: #{tpu_custom_call.1} parent=1 // pred_region
      %28 = dma.done [#allocation3], 256
    $region17: #{tpu_custom_call.1} parent=1 // pred_fallthru
      _
    %v29 = vld [vmem:[#allocation2] sm:$0xff]
    %v30 = vld [vmem:[#allocation2 + $0x8] sm:$0xff]
    %vm31 = vcmask 261120
    %v32 = vsel %vm31, %v29, 0.0
    %33 = vadd.xlane.f32.xlu0 %v32
    %v34 = vpop.xlane.xlu0 %33
    %v35 = vsel %vm31, %v30, 0.0
    %36 = vadd.xlane.f32.xlu0 %v35
    %v37 = vpop.xlane.xlu0 %36
    %v38 = vrcp.pop 32.0
    %v39 = vmul.f32 %v34, %v38
    %v40 = vmul.f32 %v37, %v38
    %v41 = vsub.f32 %v29, %v39
    %v42 = vsub.f32 %v30, %v40
    %v43 = vmul.f32 %v41, %v41
    %v44 = vmul.f32 %v42, %v42
    %v45 = vsel %vm31, %v43, 0.0
    %46 = vadd.xlane.f32.xlu0 %v45
    %v47 = vpop.xlane.xlu0 %46
    %v48 = vsel %vm31, %v44, 0.0
    %49 = vadd.xlane.f32.xlu0 %v48
    %v50 = vpop.xlane.xlu0 %49
    %v51 = vmul.f32 %v47, %v38
    %v52 = vmul.f32 %v50, %v38
    %v53 = vadd.f32 %v51, 1e-05
    %v54 = vadd.f32 %v52, 1e-05
    %v55 = vrsqrt.pop %v53
    %v56 = vrsqrt.pop %v54
    %v57 = vmul.f32 %v41, %v55
    %v58 = vmul.f32 %v42, %v56
    %v59 = vld [vmem:[%s1] sm:$0x1]
    %v61 = vlaneseq
    %v62 = vshrl.u32 %v61, 7
    %v63 = vsub.s32 0, %v62
    %v64 = vrot.slane %v59, %v63
    %v66 = vmul.f32 %v57, %v64
    %v67 = vmul.f32 %v58, %v64
    %v68 = vld [vmem:[%s2] sm:$0x1]
    %v70 = vlaneseq
    %v71 = vshrl.u32 %v70, 7
    %v72 = vsub.s32 0, %v71
    %v73 = vrot.slane %v68, %v72
    %v75 = vadd.f32 %v66, %v73
    %v76 = vadd.f32 %v67, %v73
    %77 = vst.msk [vmem:[#allocation5] sm:$0xff] %vm31, %v75
    %78 = vst.msk [vmem:[#allocation5 + $0x8] sm:$0xff] %vm31, %v76
    // Predicated region
    $region18: #{tpu_custom_call.1} parent=1 // pred_check
      _
    $region19: #{tpu_custom_call.1} parent=1 // pred_check_branch
      %80 = sbr.rel (0) target = $region21
    $region20: #{tpu_custom_call.1} parent=1 // pred_region
      %s82 = ssub.s32 256, 256
      %83 = vsyncadd [#allocation4], %s82
      %s84 = sshll.u32 [#allocation5], 4
      %s85 = int_to_ptr.vmem [resolvable:$true] %s84
      %90 = dma.vmem_to_hbm [thread:$0]  %s85, 256, %s3, [#allocation4], 128, 128, 8
    $region21: #{tpu_custom_call.1} parent=1 // pred_fallthru
      _
    // Predicated region
    $region22: #{tpu_custom_call.1} parent=1 // pred_check
      _
    $region23: #{tpu_custom_call.1} parent=1 // pred_check_branch
      %92 = sbr.rel (0) target = $region25
    $region24: #{tpu_custom_call.1} parent=1 // pred_region
      %93 = dma.done [#allocation4], 256
    $region25: #{tpu_custom_call.1} parent=1 // pred_fallthru
      _
    %94 = vsyncpa [#allocation3], 1
    %95 = vsyncpa [#allocation4], 1

</llo_original>
